<compile_context>
chip_gen: v7x
topology: tpu7x:2x2x1
jax: 0.10.0
libtpu: 0.0.40
codegen_flags: <defaults>
</compile_context>

<pallas_src>
import jax
import jax.numpy as jnp
from jax import lax
from jax.experimental import pallas as pl
from jax.experimental.pallas import tpu as pltpu


def _vmem_capacity_bytes():
    """Physical VMEM per core; conservative fallback if the query fails."""
    try:
        cap = getattr(pltpu.get_tpu_info(), "vmem_capacity_bytes", None)
        if cap:
            return int(cap)
    except Exception:
        pass
    return 64 * 1024 * 1024  # v7x per-TensorCore size (smallest current gen)


def _choose_tiles(B, S, F, D, feat_itemsize, budget_bytes):
    """Jointly pick (tb, ts) so the double-buffered working set fits VMEM.

    Block-shape legality (last-two-dims (8,128) rule; other dims full extent):
      tb == B  or  tb % 8 == 0      (out / inv_cnt blocks)
      ts == S  or  ts % 128 == 0    (mask lane dim / feat sublane dim)
    Ragged tails (cdiv grids) are handled inside the kernel.
    """
    def working_set(tb, ts):
        return (2 * tb * ts * F * feat_itemsize   # feat block, double-buffered
                + 2 * tb * 8 * ts * 4             # (tb,1,ts) mask block (sublane-padded), x2
                + 2 * (F * D + D) * 4             # weight + bias buffers
                + 2 * (tb * D + tb) * 4           # out + inv-count blocks
                + tb * F * 4)                     # f32 accumulator scratch

    tb_opts = [B] if (B <= 8 or B % 8 == 0) else []
    tb_opts += [t for t in (512, 256, 128, 64, 32, 16, 8) if t < B]
    if not tb_opts:
        tb_opts = [B]
    ts_opts = [S] + [t for t in (4096, 2048, 1024, 512, 256, 128) if t < S]

    best = None
    for tb in tb_opts:
        for ts in ts_opts:
            if working_set(tb, ts) > budget_bytes:
                continue
            key = (tb * ts, ts)        # biggest tile first, then longest seq run
            if best is None or key > best[0]:
                best = (key, (tb, ts))
    if best is not None:
        return best[1]
    # Last resort (enormous F): smallest legal tile; vmem_limit is raised anyway.
    return min(tb_opts), min(ts_opts)


def _make_encoder_kernel(seq_len, ts):
    """Masked-mean-pool + project + L2-normalize kernel, specialized per shape."""
    seq_ragged = (seq_len % ts) != 0

    def kernel(feat_ref, mask_ref, inv_cnt_ref, w_ref, b_ref, out_ref, sum_acc):
        # feat_ref:    (tb, ts, F)  f32
        # mask_ref:    (tb, 1, ts)  f32 (0/1, zero on padded tokens)
        # inv_cnt_ref: (tb, 1)      f32 = 1 / max(num_valid_tokens, 1)
        # w_ref:       (F, D)       f32
        # b_ref:       (1, D)       f32
        # out_ref:     (tb, D)      f32 (unit L2-norm rows)
        # sum_acc:     (tb, F)      f32 scratch (masked token sum)
        si = pl.program_id(1)

        @pl.when(si == 0)
        def _init():
            sum_acc[...] = jnp.zeros_like(sum_acc)

        feat = feat_ref[...].astype(jnp.float32)      # (tb, ts, F)
        mask = mask_ref[...].astype(jnp.float32)      # (tb, 1, ts)

        if seq_ragged:
            # Last seq block reads past the array end: zero both operands so
            # stale VMEM contents (possibly NaN) cannot contaminate the sum.
            start = si * ts
            pos_f = start + lax.broadcasted_iota(jnp.int32, feat.shape, 1)
            feat = jnp.where(pos_f < seq_len, feat, 0.0)
            pos_m = start + lax.broadcasted_iota(jnp.int32, mask.shape, 2)
            mask = jnp.where(pos_m < seq_len, mask, 0.0)

        # Masked token sum on the MXU: partial[b,0,f] = sum_s mask[b,0,s]*feat[b,s,f]
        # TODO(synk): if a bundle dump ever shows the vxt slot binding on v5e,
        # switch to a VPU multiply + sublane reduction instead.
        partial = jnp.einsum("bqs,bsf->bqf", mask, feat,
                             preferred_element_type=jnp.float32)   # (tb, 1, F)
        sum_acc[...] += partial[:, 0, :]

        @pl.when(si == pl.num_programs(1) - 1)
        def _finalize():
            # mean pooling (count hoisted to the wrapper), then projection.
            pooled = sum_acc[...] * inv_cnt_ref[...]                 # (tb, F)
            proj = jnp.dot(pooled, w_ref[...],
                           preferred_element_type=jnp.float32) + b_ref[...]
            # F.normalize(p=2, dim=-1, eps=1e-12) == x * rsqrt(max(|x|^2, eps^2))
            sumsq = jnp.sum(proj * proj, axis=-1, keepdims=True)
            out_ref[...] = (proj * lax.rsqrt(jnp.maximum(sumsq, 1e-24))
                            ).astype(out_ref.dtype)

    return kernel


def masked_pool_encode(feat, mask, w, b):
    """One encoder: masked mean-pool over seq + linear + L2 normalize."""
    B, S, F = feat.shape
    D = w.shape[1]

    vmem_cap = _vmem_capacity_bytes()
    budget = int(vmem_cap * 0.40)        # target for the double-buffered working set
    vmem_limit = int(vmem_cap * 0.75)    # raised scoped-VMEM limit

    tb, ts = _choose_tiles(B, S, F, D, feat.dtype.itemsize, budget)
    grid = (pl.cdiv(B, tb), pl.cdiv(S, ts))

    # Tiny host-side prep (mask is B*S elements; negligible next to feat B*S*F).
    mask_f = mask.astype(jnp.float32)                                        # (B, S)
    inv_cnt = 1.0 / jnp.maximum(jnp.sum(mask_f, axis=-1, keepdims=True), 1.0)  # (B, 1)
    mask3 = mask_f[:, None, :]                                               # (B, 1, S)
    w_f = w.astype(jnp.float32)
    b_f = b.astype(jnp.float32).reshape(1, D)

    kernel = _make_encoder_kernel(S, ts)

    return pl.pallas_call(
        kernel,
        out_shape=jax.ShapeDtypeStruct((B, D), jnp.float32),
        grid_spec=pltpu.PrefetchScalarGridSpec(
            num_scalar_prefetch=0,
            grid=grid,
            in_specs=[
                pl.BlockSpec((tb, ts, F), lambda bi, si: (bi, si, 0)),
                pl.BlockSpec((tb, 1, ts), lambda bi, si: (bi, 0, si)),
                pl.BlockSpec((tb, 1), lambda bi, si: (bi, 0)),
                pl.BlockSpec((F, D), lambda bi, si: (0, 0)),
                pl.BlockSpec((1, D), lambda bi, si: (0, 0)),
            ],
            out_specs=pl.BlockSpec((tb, D), lambda bi, si: (bi, 0)),
            scratch_shapes=[pltpu.VMEM((tb, F), jnp.float32)],
        ),
        compiler_params=pltpu.CompilerParams(
            dimension_semantics=("parallel", "arbitrary"),
            vmem_limit_bytes=vmem_limit),
    )(feat, mask3, inv_cnt, w_f, b_f)


@jax.jit
def clip_forward(images, image_mask, vis_w, vis_b,
                 texts, text_mask, txt_w, txt_b, logit_scale):
    image_embeddings = masked_pool_encode(images, image_mask, vis_w, vis_b)
    text_embeddings = masked_pool_encode(texts, text_mask, txt_w, txt_b)
    return {
        "text_features": text_embeddings,
        "image_features": image_embeddings,
        "logit_scale": jnp.exp(logit_scale),
    }


class SimpleCLIPModelPallas:
    """JAX/Pallas re-implementation of SimpleCLIPModel.forward."""

    def __init__(self, key, vis_feat_dim, txt_feat_dim, embed_dim,
                 init_logit_scale=float(jnp.log(1.0 / 0.07))):
        kv_w, kv_b, kt_w, kt_b = jax.random.split(key, 4)
        # deterministic synthetic parameter init (no checkpoint load)
        self.vis_w = jax.random.normal(kv_w, (vis_feat_dim, embed_dim),
                                       jnp.float32) * 0.02
        self.vis_b = jax.random.normal(kv_b, (1, embed_dim), jnp.float32) * 0.02
        self.txt_w = jax.random.normal(kt_w, (txt_feat_dim, embed_dim),
                                       jnp.float32) * 0.02
        self.txt_b = jax.random.normal(kt_b, (1, embed_dim), jnp.float32) * 0.02
        self.logit_scale = jnp.asarray(init_logit_scale, jnp.float32)

    def __call__(self, texts, images, text_attention_mask,
                 image_features_attention_mask):
        return clip_forward(images, image_features_attention_mask,
                            self.vis_w, self.vis_b,
                            texts, text_attention_mask,
                            self.txt_w, self.txt_b,
                            self.logit_scale)


def _reference_encode(feat, mask, w, b):
    """Pure-JAX reference (masked mean pool -> linear -> L2 normalize)."""
    m = mask.astype(jnp.float32)
    # NOTE: rows with an all-zero mask use a clamped count of 1 (pooled == 0),
    # matching the kernel's clamp (the PyTorch reference encoder is unspecified).
    cnt = jnp.maximum(jnp.sum(m, axis=-1, keepdims=True), 1.0)
    pooled = jnp.sum(feat * m[..., None], axis=1) / cnt
    proj = pooled @ w + b.reshape(1, -1)
    norm = jnp.sqrt(jnp.maximum(jnp.sum(proj * proj, axis=-1, keepdims=True), 1e-24))
    return proj / norm


if __name__ == "__main__":
    # small shapes: batch=2, image tokens N=16, text tokens L=8,
    # vision feat dim=32, text feat dim=32, shared embed dim D=32
    B, N, L, DV, DT, D = 2, 16, 8, 32, 32, 32

    key = jax.random.PRNGKey(0)
    k_img, k_txt, k_params = jax.random.split(key, 3)

    images = jax.random.normal(k_img, (B, N, DV), jnp.float32)           # (B, N, Dv)
    texts = jax.random.normal(k_txt, (B, L, DT), jnp.float32)            # (B, L, Dt)
    image_mask = jnp.ones((B, N), jnp.float32).at[0, N // 2:].set(0.0)   # (B, N)
    text_mask = jnp.ones((B, L), jnp.float32).at[1, L // 2:].set(0.0)    # (B, L)

    model = SimpleCLIPModelPallas(k_params, DV, DT, D)
    out = model(texts, images, text_mask, image_mask)
    jax.block_until_ready(out)

    # sanity: shapes, unit norms, and agreement with a pure-JAX reference
    assert out["image_features"].shape == (B, D)
    assert out["text_features"].shape == (B, D)
    assert out["logit_scale"].shape == ()

    ref_img = _reference_encode(images, image_mask, model.vis_w, model.vis_b)
    ref_txt = _reference_encode(texts, text_mask, model.txt_w, model.txt_b)
    assert jnp.allclose(out["image_features"], ref_img, atol=5e-3), "image mismatch"
    assert jnp.allclose(out["text_features"], ref_txt, atol=5e-3), "text mismatch"

    img_norms = jnp.linalg.norm(out["image_features"], axis=-1)
    txt_norms = jnp.linalg.norm(out["text_features"], axis=-1)
    assert jnp.allclose(img_norms, 1.0, atol=1e-3)
    assert jnp.allclose(txt_norms, 1.0, atol=1e-3)

    print("KERNEL_OK")
</pallas_src>

<mosaic_0001>
module attributes {stable_mosaic.version = 11 : i64} {
  func.func @kernel(%arg0: i32, %arg1: i32, %arg2: memref<2x16x32xf32, #tpu.memory_space<vmem>>, %arg3: memref<2x1x16xf32, #tpu.memory_space<vmem>>, %arg4: memref<2x1xf32, #tpu.memory_space<vmem>>, %arg5: memref<32x32xf32, #tpu.memory_space<vmem>>, %arg6: memref<1x32xf32, #tpu.memory_space<vmem>>, %arg7: memref<2x32xf32, #tpu.memory_space<vmem>>, %arg8: memref<2x32xf32, #tpu.memory_space<vmem>>) attributes {dimension_semantics = [#tpu.dimension_semantics<parallel>, #tpu.dimension_semantics<arbitrary>], iteration_bounds = array<i64: 1, 1>, scalar_prefetch = 0 : i64, scratch_operands = 1 : i64, tpu.core_type = #tpu.core_type<tc>, window_params = [{transform_indices = @transform_0, window_bounds = array<i64: 2, 16, 32>}, {transform_indices = @transform_1, window_bounds = array<i64: 2, 1, 16>}, {transform_indices = @transform_2, window_bounds = array<i64: 2, 1>}, {pipeline_mode = #tpu.pipeline_mode<synchronous>, transform_indices = @transform_3, window_bounds = array<i64: 32, 32>}, {pipeline_mode = #tpu.pipeline_mode<synchronous>, transform_indices = @transform_4, window_bounds = array<i64: 1, 32>}, {transform_indices = @transform_5, window_bounds = array<i64: 2, 32>}]} {
    %c0_i32 = arith.constant 0 : i32
    %0 = arith.cmpi eq, %arg1, %c0_i32 : i32
    %1 = arith.extui %0 : i1 to i32
    %c0_i32_0 = arith.constant 0 : i32
    %2 = arith.cmpi ne, %1, %c0_i32_0 : i32
    scf.if %2 {
      %cst_12 = arith.constant 0.000000e+00 : f32
      %13 = vector.broadcast %cst_12 : f32 to vector<2x32xf32>
      %c0_13 = arith.constant 0 : index
      %c0_14 = arith.constant 0 : index
      %14 = vector.load %arg8[%c0_13, %c0_14] : memref<2x32xf32, #tpu.memory_space<vmem>>, vector<2x32xf32>
      tpu.vector_store %arg8[%c0_13, %c0_14], %13 {strides = array<i32>} : memref<2x32xf32, #tpu.memory_space<vmem>>, vector<2x32xf32>,
    } else {
    }
    %c0 = arith.constant 0 : index
    %c0_1 = arith.constant 0 : index
    %c0_2 = arith.constant 0 : index
    %3 = vector.load %arg2[%c0, %c0_1, %c0_2] : memref<2x16x32xf32, #tpu.memory_space<vmem>>, vector<2x16x32xf32>
    %c0_3 = arith.constant 0 : index
    %c0_4 = arith.constant 0 : index
    %c0_5 = arith.constant 0 : index
    %4 = vector.load %arg3[%c0_3, %c0_4, %c0_5] : memref<2x1x16xf32, #tpu.memory_space<vmem>>, vector<2x1x16xf32>
    "tpu.trace_start"() <{level = 10 : i32, message = "bqs,bsf->bqf"}> : () -> ()
    %cst = arith.constant dense<0.000000e+00> : vector<2x1x32xf32>
    %5 = tpu.matmul %4, %3, %cst {dimension_numbers = #tpu.dot_dimension_numbers<[2], [1], [1], [2], [0, 0, 0, 1, 1, 2], [0], [0]>} : vector<2x1x16xf32>, vector<2x16x32xf32>, vector<2x1x32xf32> -> vector<2x1x32xf32>
    "tpu.trace_stop"() : () -> ()
    %c0_6 = arith.constant 0 : index
    %c0_7 = arith.constant 0 : index
    %6 = vector.load %arg8[%c0_6, %c0_7] : memref<2x32xf32, #tpu.memory_space<vmem>>, vector<2x32xf32>
    %7 = vector.shape_cast %5 : vector<2x1x32xf32> to vector<2x32xf32>
    %8 = arith.addf %6, %7 : vector<2x32xf32>
    %c0_8 = arith.constant 0 : index
    %c0_9 = arith.constant 0 : index
    %9 = vector.load %arg8[%c0_8, %c0_9] : memref<2x32xf32, #tpu.memory_space<vmem>>, vector<2x32xf32>
    tpu.vector_store %arg8[%c0_8, %c0_9], %8 {strides = array<i32>} : memref<2x32xf32, #tpu.memory_space<vmem>>, vector<2x32xf32>,
    %c0_i32_10 = arith.constant 0 : i32
    %10 = arith.cmpi eq, %arg1, %c0_i32_10 : i32
    %11 = arith.extui %10 : i1 to i32
    %c0_i32_11 = arith.constant 0 : i32
    %12 = arith.cmpi ne, %11, %c0_i32_11 : i32
    scf.if %12 {
      %c0_12 = arith.constant 0 : index
      %c0_13 = arith.constant 0 : index
      %13 = vector.load %arg8[%c0_12, %c0_13] : memref<2x32xf32, #tpu.memory_space<vmem>>, vector<2x32xf32>
      %c0_14 = arith.constant 0 : index
      %c0_15 = arith.constant 0 : index
      %14 = vector.load %arg4[%c0_14, %c0_15] : memref<2x1xf32, #tpu.memory_space<vmem>>, vector<2x1xf32>
      %15 = vector.broadcast %14 : vector<2x1xf32> to vector<2x32xf32>
      %16 = arith.mulf %13, %15 : vector<2x32xf32>
      %c0_16 = arith.constant 0 : index
      %c0_17 = arith.constant 0 : index
      %17 = vector.load %arg5[%c0_16, %c0_17] : memref<32x32xf32, #tpu.memory_space<vmem>>, vector<32x32xf32>
      %cst_18 = arith.constant dense<0.000000e+00> : vector<2x32xf32>
      %18 = tpu.matmul %16, %17, %cst_18 {dimension_numbers = #tpu.dot_dimension_numbers<[1], [0], [0], [1], [0, 0, 1, 1], [], []>} : vector<2x32xf32>, vector<32x32xf32>, vector<2x32xf32> -> vector<2x32xf32>
      %c0_19 = arith.constant 0 : index
      %c0_20 = arith.constant 0 : index
      %19 = vector.load %arg6[%c0_19, %c0_20] : memref<1x32xf32, #tpu.memory_space<vmem>>, vector<1x32xf32>
      %20 = vector.broadcast %19 : vector<1x32xf32> to vector<2x32xf32>
      %21 = arith.addf %18, %20 : vector<2x32xf32>
      %22 = arith.mulf %21, %21 : vector<2x32xf32>
      %cst_21 = arith.constant dense<0.000000e+00> : vector<2xf32>
      %23 = vector.multi_reduction <add>, %22, %cst_21 [1] : vector<2x32xf32> to vector<2xf32>
      %24 = vector.shape_cast %23 : vector<2xf32> to vector<2x1xf32>
      %cst_22 = arith.constant 1.000000e-24 : f32
      %25 = vector.broadcast %cst_22 : f32 to vector<2x1xf32>
      %26 = arith.maximumf %24, %25 : vector<2x1xf32>
      %27 = math.rsqrt %26 : vector<2x1xf32>
      %28 = vector.broadcast %27 : vector<2x1xf32> to vector<2x32xf32>
      %29 = arith.mulf %21, %28 : vector<2x32xf32>
      %c0_23 = arith.constant 0 : index
      %c0_24 = arith.constant 0 : index
      %30 = vector.load %arg7[%c0_23, %c0_24] : memref<2x32xf32, #tpu.memory_space<vmem>>, vector<2x32xf32>
      tpu.vector_store %arg7[%c0_23, %c0_24], %29 {strides = array<i32>} : memref<2x32xf32, #tpu.memory_space<vmem>>, vector<2x32xf32>,
    } else {
    }
    return
  }
  func.func @transform_0(%arg0: i32, %arg1: i32) -> (i32, i32, i32) {
    %c0_i32 = arith.constant 0 : i32
    %c0_i32_0 = arith.constant 0 : i32
    return %arg0, %arg1, %c0_i32 : i32, i32, i32
  }
  func.func @transform_1(%arg0: i32, %arg1: i32) -> (i32, i32, i32) {
    %c0_i32 = arith.constant 0 : i32
    %c0_i32_0 = arith.constant 0 : i32
    return %arg0, %c0_i32, %arg1 : i32, i32, i32
  }
  func.func @transform_2(%arg0: i32, %arg1: i32) -> (i32, i32) {
    %c0_i32 = arith.constant 0 : i32
    %c0_i32_0 = arith.constant 0 : i32
    return %arg0, %c0_i32 : i32, i32
  }
  func.func @transform_3(%arg0: i32, %arg1: i32) -> (i32, i32) {
    %c0_i32 = arith.constant 0 : i32
    %c0_i32_0 = arith.constant 0 : i32
    %c0_i32_1 = arith.constant 0 : i32
    return %c0_i32, %c0_i32_0 : i32, i32
  }
  func.func @transform_4(%arg0: i32, %arg1: i32) -> (i32, i32) {
    %c0_i32 = arith.constant 0 : i32
    %c0_i32_0 = arith.constant 0 : i32
    %c0_i32_1 = arith.constant 0 : i32
    return %c0_i32, %c0_i32_0 : i32, i32
  }
  func.func @transform_5(%arg0: i32, %arg1: i32) -> (i32, i32) {
    %c0_i32 = arith.constant 0 : i32
    %c0_i32_0 = arith.constant 0 : i32
    return %arg0, %c0_i32 : i32, i32
  }
}

module attributes {stable_mosaic.version = 11 : i64} {
  func.func @kernel(%arg0: i32, %arg1: i32, %arg2: memref<2x8x32xf32, #tpu.memory_space<vmem>>, %arg3: memref<2x1x8xf32, #tpu.memory_space<vmem>>, %arg4: memref<2x1xf32, #tpu.memory_space<vmem>>, %arg5: memref<32x32xf32, #tpu.memory_space<vmem>>, %arg6: memref<1x32xf32, #tpu.memory_space<vmem>>, %arg7: memref<2x32xf32, #tpu.memory_space<vmem>>, %arg8: memref<2x32xf32, #tpu.memory_space<vmem>>) attributes {dimension_semantics = [#tpu.dimension_semantics<parallel>, #tpu.dimension_semantics<arbitrary>], iteration_bounds = array<i64: 1, 1>, scalar_prefetch = 0 : i64, scratch_operands = 1 : i64, tpu.core_type = #tpu.core_type<tc>, window_params = [{transform_indices = @transform_0, window_bounds = array<i64: 2, 8, 32>}, {transform_indices = @transform_1, window_bounds = array<i64: 2, 1, 8>}, {transform_indices = @transform_2, window_bounds = array<i64: 2, 1>}, {pipeline_mode = #tpu.pipeline_mode<synchronous>, transform_indices = @transform_3, window_bounds = array<i64: 32, 32>}, {pipeline_mode = #tpu.pipeline_mode<synchronous>, transform_indices = @transform_4, window_bounds = array<i64: 1, 32>}, {transform_indices = @transform_5, window_bounds = array<i64: 2, 32>}]} {
    %c0_i32 = arith.constant 0 : i32
    %0 = arith.cmpi eq, %arg1, %c0_i32 : i32
    %1 = arith.extui %0 : i1 to i32
    %c0_i32_0 = arith.constant 0 : i32
    %2 = arith.cmpi ne, %1, %c0_i32_0 : i32
    scf.if %2 {
      %cst_12 = arith.constant 0.000000e+00 : f32
      %13 = vector.broadcast %cst_12 : f32 to vector<2x32xf32>
      %c0_13 = arith.constant 0 : index
      %c0_14 = arith.constant 0 : index
      %14 = vector.load %arg8[%c0_13, %c0_14] : memref<2x32xf32, #tpu.memory_space<vmem>>, vector<2x32xf32>
      tpu.vector_store %arg8[%c0_13, %c0_14], %13 {strides = array<i32>} : memref<2x32xf32, #tpu.memory_space<vmem>>, vector<2x32xf32>,
    } else {
    }
    %c0 = arith.constant 0 : index
    %c0_1 = arith.constant 0 : index
    %c0_2 = arith.constant 0 : index
    %3 = vector.load %arg2[%c0, %c0_1, %c0_2] : memref<2x8x32xf32, #tpu.memory_space<vmem>>, vector<2x8x32xf32>
    %c0_3 = arith.constant 0 : index
    %c0_4 = arith.constant 0 : index
    %c0_5 = arith.constant 0 : index
    %4 = vector.load %arg3[%c0_3, %c0_4, %c0_5] : memref<2x1x8xf32, #tpu.memory_space<vmem>>, vector<2x1x8xf32>
    "tpu.trace_start"() <{level = 10 : i32, message = "bqs,bsf->bqf"}> : () -> ()
    %cst = arith.constant dense<0.000000e+00> : vector<2x1x32xf32>
    %5 = tpu.matmul %4, %3, %cst {dimension_numbers = #tpu.dot_dimension_numbers<[2], [1], [1], [2], [0, 0, 0, 1, 1, 2], [0], [0]>} : vector<2x1x8xf32>, vector<2x8x32xf32>, vector<2x1x32xf32> -> vector<2x1x32xf32>
    "tpu.trace_stop"() : () -> ()
    %c0_6 = arith.constant 0 : index
    %c0_7 = arith.constant 0 : index
    %6 = vector.load %arg8[%c0_6, %c0_7] : memref<2x32xf32, #tpu.memory_space<vmem>>, vector<2x32xf32>
    %7 = vector.shape_cast %5 : vector<2x1x32xf32> to vector<2x32xf32>
    %8 = arith.addf %6, %7 : vector<2x32xf32>
    %c0_8 = arith.constant 0 : index
    %c0_9 = arith.constant 0 : index
    %9 = vector.load %arg8[%c0_8, %c0_9] : memref<2x32xf32, #tpu.memory_space<vmem>>, vector<2x32xf32>
    tpu.vector_store %arg8[%c0_8, %c0_9], %8 {strides = array<i32>} : memref<2x32xf32, #tpu.memory_space<vmem>>, vector<2x32xf32>,
    %c0_i32_10 = arith.constant 0 : i32
    %10 = arith.cmpi eq, %arg1, %c0_i32_10 : i32
    %11 = arith.extui %10 : i1 to i32
    %c0_i32_11 = arith.constant 0 : i32
    %12 = arith.cmpi ne, %11, %c0_i32_11 : i32
    scf.if %12 {
      %c0_12 = arith.constant 0 : index
      %c0_13 = arith.constant 0 : index
      %13 = vector.load %arg8[%c0_12, %c0_13] : memref<2x32xf32, #tpu.memory_space<vmem>>, vector<2x32xf32>
      %c0_14 = arith.constant 0 : index
      %c0_15 = arith.constant 0 : index
      %14 = vector.load %arg4[%c0_14, %c0_15] : memref<2x1xf32, #tpu.memory_space<vmem>>, vector<2x1xf32>
      %15 = vector.broadcast %14 : vector<2x1xf32> to vector<2x32xf32>
      %16 = arith.mulf %13, %15 : vector<2x32xf32>
      %c0_16 = arith.constant 0 : index
      %c0_17 = arith.constant 0 : index
      %17 = vector.load %arg5[%c0_16, %c0_17] : memref<32x32xf32, #tpu.memory_space<vmem>>, vector<32x32xf32>
      %cst_18 = arith.constant dense<0.000000e+00> : vector<2x32xf32>
      %18 = tpu.matmul %16, %17, %cst_18 {dimension_numbers = #tpu.dot_dimension_numbers<[1], [0], [0], [1], [0, 0, 1, 1], [], []>} : vector<2x32xf32>, vector<32x32xf32>, vector<2x32xf32> -> vector<2x32xf32>
      %c0_19 = arith.constant 0 : index
      %c0_20 = arith.constant 0 : index
      %19 = vector.load %arg6[%c0_19, %c0_20] : memref<1x32xf32, #tpu.memory_space<vmem>>, vector<1x32xf32>
      %20 = vector.broadcast %19 : vector<1x32xf32> to vector<2x32xf32>
      %21 = arith.addf %18, %20 : vector<2x32xf32>
      %22 = arith.mulf %21, %21 : vector<2x32xf32>
      %cst_21 = arith.constant dense<0.000000e+00> : vector<2xf32>
      %23 = vector.multi_reduction <add>, %22, %cst_21 [1] : vector<2x32xf32> to vector<2xf32>
      %24 = vector.shape_cast %23 : vector<2xf32> to vector<2x1xf32>
      %cst_22 = arith.constant 1.000000e-24 : f32
      %25 = vector.broadcast %cst_22 : f32 to vector<2x1xf32>
      %26 = arith.maximumf %24, %25 : vector<2x1xf32>
      %27 = math.rsqrt %26 : vector<2x1xf32>
      %28 = vector.broadcast %27 : vector<2x1xf32> to vector<2x32xf32>
      %29 = arith.mulf %21, %28 : vector<2x32xf32>
      %c0_23 = arith.constant 0 : index
      %c0_24 = arith.constant 0 : index
      %30 = vector.load %arg7[%c0_23, %c0_24] : memref<2x32xf32, #tpu.memory_space<vmem>>, vector<2x32xf32>
      tpu.vector_store %arg7[%c0_23, %c0_24], %29 {strides = array<i32>} : memref<2x32xf32, #tpu.memory_space<vmem>>, vector<2x32xf32>,
    } else {
    }
    return
  }
  func.func @transform_0(%arg0: i32, %arg1: i32) -> (i32, i32, i32) {
    %c0_i32 = arith.constant 0 : i32
    %c0_i32_0 = arith.constant 0 : i32
    return %arg0, %arg1, %c0_i32 : i32, i32, i32
  }
  func.func @transform_1(%arg0: i32, %arg1: i32) -> (i32, i32, i32) {
    %c0_i32 = arith.constant 0 : i32
    %c0_i32_0 = arith.constant 0 : i32
    return %arg0, %c0_i32, %arg1 : i32, i32, i32
  }
  func.func @transform_2(%arg0: i32, %arg1: i32) -> (i32, i32) {
    %c0_i32 = arith.constant 0 : i32
    %c0_i32_0 = arith.constant 0 : i32
    return %arg0, %c0_i32 : i32, i32
  }
  func.func @transform_3(%arg0: i32, %arg1: i32) -> (i32, i32) {
    %c0_i32 = arith.constant 0 : i32
    %c0_i32_0 = arith.constant 0 : i32
    %c0_i32_1 = arith.constant 0 : i32
    return %c0_i32, %c0_i32_0 : i32, i32
  }
  func.func @transform_4(%arg0: i32, %arg1: i32) -> (i32, i32) {
    %c0_i32 = arith.constant 0 : i32
    %c0_i32_0 = arith.constant 0 : i32
    %c0_i32_1 = arith.constant 0 : i32
    return %c0_i32, %c0_i32_0 : i32, i32
  }
  func.func @transform_5(%arg0: i32, %arg1: i32) -> (i32, i32) {
    %c0_i32 = arith.constant 0 : i32
    %c0_i32_0 = arith.constant 0 : i32
    return %arg0, %c0_i32 : i32, i32
  }
}

</mosaic_0001>

<llo_original>
// kernel: clip_forward.3
$region0: #{clip_forward.3}
  #allocation0 [shape = 'u32[]', space=smem, size = 0x4, offset = 0x4, fixed_abs, tag = 'smem constant byte address 0x4 - core index']
  #allocation1 [shape = 'u32[144,128]{1,0:T(1,128)}', space=vmem, size = 0x12000, scoped, tag = 'internal scratch']
  #allocation2 [shape = 'f32[2,32]{1,0:T(2,128)}', space=vmem, size = 0x400, scoped, tag = 'scratch operand']
  %s0 = inlined_call_operand.vmem [shape: f32[2,8,32], index: 0, kind: input, shape index: {}]
  %s1 = inlined_call_operand.vmem [shape: f32[2,1,8], index: 1, kind: input, shape index: {}]
  %s2 = inlined_call_operand.vmem [shape: f32[2,1], index: 2, kind: input, shape index: {}]
  %s3 = inlined_call_operand.vmem [shape: f32[32,32], index: 3, kind: input, shape index: {}]
  %s4 = inlined_call_operand.vmem [shape: f32[1,32], index: 4, kind: input, shape index: {}]
  %s5 = inlined_call_operand.hbm [shape: f32[2,32], index: 5, kind: output, shape index: {}]
  %s6 = sld [smem:[#allocation0]]
  $region38: #{clip_forward.3} parent=0
    _
  %s8 = ssub.s32 1, %s6
  %s9 = scalar_select 0, %s8, %s6
  $region1: #{clip_forward.3} parent=0
    #allocation3 [shape = 'u8[1024]{0}', space=vmem, size = 0x400, scoped, tag = 'output window, operand 0, single buffered']
    #allocation4 [shape = 's32[1]{0}', space=sflag, size = 0x4, scoped, tag = 'scoped memory for clip_forward.3']
    %10 = vsyncpa [#allocation4], 0
    // Predicated region
    $region2: #{clip_forward.3} parent=1 // pred_check
      _
    $region3: #{clip_forward.3} parent=1 // pred_check_branch
      %12 = sbr.rel (0) target = $region5
    $region4: #{clip_forward.3} parent=1 // pred_region
      _
    $region5: #{clip_forward.3} parent=1 // pred_fallthru
      _
    // Predicated region
    $region6: #{clip_forward.3} parent=1 // pred_check
      _
    $region7: #{clip_forward.3} parent=1 // pred_check_branch
      %14 = sbr.rel (0) target = $region9
    $region8: #{clip_forward.3} parent=1 // pred_region
      _
    $region9: #{clip_forward.3} parent=1 // pred_fallthru
      _
    // Predicated region
    $region10: #{clip_forward.3} parent=1 // pred_check
      _
    $region11: #{clip_forward.3} parent=1 // pred_check_branch
      %16 = sbr.rel (0) target = $region13
    $region12: #{clip_forward.3} parent=1 // pred_region
      _
    $region13: #{clip_forward.3} parent=1 // pred_fallthru
      _
    // Predicated region
    $region14: #{clip_forward.3} parent=1 // pred_check
      _
    $region15: #{clip_forward.3} parent=1 // pred_check_branch
      %18 = sbr.rel (0) target = $region17
    $region16: #{clip_forward.3} parent=1 // pred_region
      _
    $region17: #{clip_forward.3} parent=1 // pred_fallthru
      _
    // Predicated region
    $region18: #{clip_forward.3} parent=1 // pred_check
      _
    $region19: #{clip_forward.3} parent=1 // pred_check_branch
      %20 = sbr.rel (0) target = $region21
    $region20: #{clip_forward.3} parent=1 // pred_region
      _
    $region21: #{clip_forward.3} parent=1 // pred_fallthru
      _
    %p21 = scmp.eq.s32.totalorder 0, 0
    // Predicated region
    $region22: #{clip_forward.3} parent=1 // pred_check
      %p22 = pneg %p21
    $region23: #{clip_forward.3} parent=1 // pred_check_branch
      %24 = sbr.rel (%p22) target = $region25
    $region24: #{clip_forward.3} parent=1 // pred_region
      %vm25 = vcmask 254976
      %26 = vst.msk [vmem:[#allocation2] sm:$0x3] %vm25, 0.0
    $region25: #{clip_forward.3} parent=1 // pred_fallthru
      _
    %v27 = vld [vmem:[%s0] sm:$0xff]
    %v28 = vld [vmem:[%s0 + $0x8] sm:$0xff]
    %v29 = vld [vmem:[%s1] sm:$0x1]
    %v30 = vld [vmem:[%s1 + $0x1] sm:$0x1]
    %vm31 = vcmask 64512
    %v33 = vsel %vm31, %v29, 0
    %35 = vmatprep.subr.mxu0 0.0
    %36 = vmatpush1.msra.mxu0 %v27
    %37 = vmatprep.subr.mxu0 0.0
    %38 = vmatpush1.msra.mxu0 0.0
    %39 = vmatprep.subr.mxu0 0.0
    %40 = vmatpush1.msra.mxu0 0.0
    %41 = vmatprep.subr.mxu0 0.0
    %42 = vmatpush1.msra.mxu0 0.0
    %43 = vmatprep.subr.mxu0 0.0
    %44 = vmatpush1.msra.mxu0 0.0
    %45 = vmatprep.subr.mxu0 0.0
    %46 = vmatpush1.msra.mxu0 0.0
    %47 = vmatprep.subr.mxu0 0.0
    %48 = vmatpush1.msra.mxu0 0.0
    %49 = vmatprep.subr.mxu0 0.0
    %50 = vmatpush1.msra.mxu0 0.0
    %51 = vmatprep.subr.mxu0 0.0
    %52 = vmatpush1.msra.mxu0 0.0
    %53 = vmatprep.subr.mxu0 0.0
    %54 = vmatpush1.msra.mxu0 0.0
    %55 = vmatprep.subr.mxu0 0.0
    %56 = vmatpush1.msra.mxu0 0.0
    %57 = vmatprep.subr.mxu0 0.0
    %58 = vmatpush1.msra.mxu0 0.0
    %59 = vmatprep.subr.mxu0 0.0
    %60 = vmatpush1.msra.mxu0 0.0
    %61 = vmatprep.subr.mxu0 0.0
    %62 = vmatpush1.msra.mxu0 0.0
    %63 = vmatprep.subr.mxu0 0.0
    %64 = vmatpush1.msra.mxu0 0.0
    %65 = vmatprep.subr.mxu0 0.0
    %66 = vmatpush1.msra.mxu0 0.0
    %67 = vmatprep.subr.mxu0 0.0
    %68 = vmatpush1.msra.mxu0 0.0
    %69 = vmatprep.subr.mxu0 0.0
    %70 = vmatpush1.msra.mxu0 0.0
    %71 = vmatprep.subr.mxu0 0.0
    %72 = vmatpush1.msra.mxu0 0.0
    %73 = vmatprep.subr.mxu0 0.0
    %74 = vmatpush1.msra.mxu0 0.0
    %75 = vmatprep.subr.mxu0 0.0
    %76 = vmatpush1.msra.mxu0 0.0
    %77 = vmatprep.subr.mxu0 0.0
    %78 = vmatpush1.msra.mxu0 0.0
    %79 = vmatprep.subr.mxu0 0.0
    %80 = vmatpush1.msra.mxu0 0.0
    %81 = vmatprep.subr.mxu0 0.0
    %82 = vmatpush1.msra.mxu0 0.0
    %83 = vmatprep.subr.mxu0 0.0
    %84 = vmatpush1.msra.mxu0 0.0
    %85 = vmatprep.subr.mxu0 0.0
    %86 = vmatpush1.msra.mxu0 0.0
    %87 = vmatprep.subr.mxu0 0.0
    %88 = vmatpush1.msra.mxu0 0.0
    %89 = vmatprep.subr.mxu0 0.0
    %90 = vmatpush1.msra.mxu0 0.0
    %91 = vmatprep.subr.mxu0 0.0
    %92 = vmatpush1.msra.mxu0 0.0
    %93 = vmatprep.subr.mxu0 0.0
    %94 = vmatpush1.msra.mxu0 0.0
    %95 = vmatprep.subr.mxu0 0.0
    %96 = vmatpush1.msra.mxu0 0.0
    %97 = vmatprep.subr.mxu0 0.0
    %98 = vmatpush1.msra.mxu0 0.0
    %99 = vmatprep.mubr.f32.mxu0 0.0
    %100 = vmatmul.mubr.f32.gmra.mrb[0].mxu0 %v33
    %v101 = vpop.f32.mrb[0].mxu0
    %v102 = vadd.f32 0.0, %v101
    %v103 = vpop.f32.mrb[0].mxu0
    %104 = vdwg.mxu0
    %v106 = vsel %vm31, %v30, 0
    %108 = vmatprep.subr.mxu0 0.0
    %109 = vmatpush1.msra.mxu0 %v28
    %110 = vmatprep.subr.mxu0 0.0
    %111 = vmatpush1.msra.mxu0 0.0
    %112 = vmatprep.subr.mxu0 0.0
    %113 = vmatpush1.msra.mxu0 0.0
    %114 = vmatprep.subr.mxu0 0.0
    %115 = vmatpush1.msra.mxu0 0.0
    %116 = vmatprep.subr.mxu0 0.0
    %117 = vmatpush1.msra.mxu0 0.0
    %118 = vmatprep.subr.mxu0 0.0
    %119 = vmatpush1.msra.mxu0 0.0
    %120 = vmatprep.subr.mxu0 0.0
    %121 = vmatpush1.msra.mxu0 0.0
    %122 = vmatprep.subr.mxu0 0.0
    %123 = vmatpush1.msra.mxu0 0.0
    %124 = vmatprep.subr.mxu0 0.0
    %125 = vmatpush1.msra.mxu0 0.0
    %126 = vmatprep.subr.mxu0 0.0
    %127 = vmatpush1.msra.mxu0 0.0
    %128 = vmatprep.subr.mxu0 0.0
    %129 = vmatpush1.msra.mxu0 0.0
    %130 = vmatprep.subr.mxu0 0.0
    %131 = vmatpush1.msra.mxu0 0.0
    %132 = vmatprep.subr.mxu0 0.0
    %133 = vmatpush1.msra.mxu0 0.0
    %134 = vmatprep.subr.mxu0 0.0
    %135 = vmatpush1.msra.mxu0 0.0
    %136 = vmatprep.subr.mxu0 0.0
    %137 = vmatpush1.msra.mxu0 0.0
    %138 = vmatprep.subr.mxu0 0.0
    %139 = vmatpush1.msra.mxu0 0.0
    %140 = vmatprep.subr.mxu0 0.0
    %141 = vmatpush1.msra.mxu0 0.0
    %142 = vmatprep.subr.mxu0 0.0
    %143 = vmatpush1.msra.mxu0 0.0
    %144 = vmatprep.subr.mxu0 0.0
    %145 = vmatpush1.msra.mxu0 0.0
    %146 = vmatprep.subr.mxu0 0.0
    %147 = vmatpush1.msra.mxu0 0.0
    %148 = vmatprep.subr.mxu0 0.0
    %149 = vmatpush1.msra.mxu0 0.0
    %150 = vmatprep.subr.mxu0 0.0
    %151 = vmatpush1.msra.mxu0 0.0
    %152 = vmatprep.subr.mxu0 0.0
    %153 = vmatpush1.msra.mxu0 0.0
    %154 = vmatprep.subr.mxu0 0.0
    %155 = vmatpush1.msra.mxu0 0.0
    %156 = vmatprep.subr.mxu0 0.0
    %157 = vmatpush1.msra.mxu0 0.0
    %158 = vmatprep.subr.mxu0 0.0
    %159 = vmatpush1.msra.mxu0 0.0
    %160 = vmatprep.subr.mxu0 0.0
    %161 = vmatpush1.msra.mxu0 0.0
    %162 = vmatprep.subr.mxu0 0.0
    %163 = vmatpush1.msra.mxu0 0.0
    %164 = vmatprep.subr.mxu0 0.0
    %165 = vmatpush1.msra.mxu0 0.0
    %166 = vmatprep.subr.mxu0 0.0
    %167 = vmatpush1.msra.mxu0 0.0
    %168 = vmatprep.subr.mxu0 0.0
    %169 = vmatpush1.msra.mxu0 0.0
    %170 = vmatprep.subr.mxu0 0.0
    %171 = vmatpush1.msra.mxu0 0.0
    %172 = vmatprep.mubr.f32.mxu0 0.0
    %173 = vmatmul.mubr.f32.gmra.mrb[0].mxu0 %v106
    %v174 = vpop.f32.mrb[0].mxu0
    %v175 = vadd.f32 0.0, %v174
    %v176 = vpop.f32.mrb[0].mxu0
    %177 = vdwg.mxu0
    %v178 = vld [vmem:[#allocation2] sm:$0x3]
    %v181 = vrot.slane %v175, 7
    %vm182 = vcmask 1041409
    %v183 = vsel %vm182, %v181, %v102
    %v185 = vadd.f32 %v178, %v183
    %vm186 = vcmask 254976
    %187 = vst.msk [vmem:[#allocation2] sm:$0x3] %vm186, %v185
    // Predicated region
    $region26: #{clip_forward.3} parent=1 // pred_check
      %p188 = pneg %p21
    $region27: #{clip_forward.3} parent=1 // pred_check_branch
      %190 = sbr.rel (%p188) target = $region29
    $region28: #{clip_forward.3} parent=1 // pred_region
      %v191 = vld [vmem:[#allocation2] sm:$0x3]
      %v192 = vld [vmem:[%s2] sm:$0x3]
      %194 = vset.pattern.permute.xlu0 0
      %195 = vperm.xlu0 %194, %v192
      %v196 = vpop.permute.xlu0 %195
      %v198 = vmul.f32 %v191, %v196
      %v199 = vld [vmem:[%s3] sm:$0xff]
      %v200 = vld [vmem:[%s3 + $0x8] sm:$0xff]
      %v201 = vld [vmem:[%s3 + $0x10] sm:$0xff]
      %v202 = vld [vmem:[%s3 + $0x18] sm:$0xff]
      %v203 = vld [vmem:[%s4] sm:$0x1]
      %v205 = vlaneseq
      %v206 = vshrl.u32 %v205, 7
      %v207 = vsub.s32 0, %v206
      %v208 = vrot.slane %v203, %v207
      %vm210 = vcmask 261120
      %v212 = vsel %vm210, %v198, 0
      %214 = vmatprep.subr.mxu0 0.0
      %215 = vmatpush1.msra.mxu0 %v199
      %216 = vmatprep.subr.mxu0 0.0
      %217 = vmatpush1.msra.mxu0 %v200
      %218 = vmatprep.subr.mxu0 0.0
      %219 = vmatpush1.msra.mxu0 %v201
      %220 = vmatprep.subr.mxu0 0.0
      %221 = vmatpush1.msra.mxu0 %v202
      %222 = vmatprep.subr.mxu0 0.0
      %223 = vmatpush1.msra.mxu0 0.0
      %224 = vmatprep.subr.mxu0 0.0
      %225 = vmatpush1.msra.mxu0 0.0
      %226 = vmatprep.subr.mxu0 0.0
      %227 = vmatpush1.msra.mxu0 0.0
      %228 = vmatprep.subr.mxu0 0.0
      %229 = vmatpush1.msra.mxu0 0.0
      %230 = vmatprep.subr.mxu0 0.0
      %231 = vmatpush1.msra.mxu0 0.0
      %232 = vmatprep.subr.mxu0 0.0
      %233 = vmatpush1.msra.mxu0 0.0
      %234 = vmatprep.subr.mxu0 0.0
      %235 = vmatpush1.msra.mxu0 0.0
      %236 = vmatprep.subr.mxu0 0.0
      %237 = vmatpush1.msra.mxu0 0.0
      %238 = vmatprep.subr.mxu0 0.0
      %239 = vmatpush1.msra.mxu0 0.0
      %240 = vmatprep.subr.mxu0 0.0
      %241 = vmatpush1.msra.mxu0 0.0
      %242 = vmatprep.subr.mxu0 0.0
      %243 = vmatpush1.msra.mxu0 0.0
      %244 = vmatprep.subr.mxu0 0.0
      %245 = vmatpush1.msra.mxu0 0.0
      %246 = vmatprep.subr.mxu0 0.0
      %247 = vmatpush1.msra.mxu0 0.0
      %248 = vmatprep.subr.mxu0 0.0
      %249 = vmatpush1.msra.mxu0 0.0
      %250 = vmatprep.subr.mxu0 0.0
      %251 = vmatpush1.msra.mxu0 0.0
      %252 = vmatprep.subr.mxu0 0.0
      %253 = vmatpush1.msra.mxu0 0.0
      %254 = vmatprep.subr.mxu0 0.0
      %255 = vmatpush1.msra.mxu0 0.0
      %256 = vmatprep.subr.mxu0 0.0
      %257 = vmatpush1.msra.mxu0 0.0
      %258 = vmatprep.subr.mxu0 0.0
      %259 = vmatpush1.msra.mxu0 0.0
      %260 = vmatprep.subr.mxu0 0.0
      %261 = vmatpush1.msra.mxu0 0.0
      %262 = vmatprep.subr.mxu0 0.0
      %263 = vmatpush1.msra.mxu0 0.0
      %264 = vmatprep.subr.mxu0 0.0
      %265 = vmatpush1.msra.mxu0 0.0
      %266 = vmatprep.subr.mxu0 0.0
      %267 = vmatpush1.msra.mxu0 0.0
      %268 = vmatprep.subr.mxu0 0.0
      %269 = vmatpush1.msra.mxu0 0.0
      %270 = vmatprep.subr.mxu0 0.0
      %271 = vmatpush1.msra.mxu0 0.0
      %272 = vmatprep.subr.mxu0 0.0
      %273 = vmatpush1.msra.mxu0 0.0
      %274 = vmatprep.subr.mxu0 0.0
      %275 = vmatpush1.msra.mxu0 0.0
      %276 = vmatprep.subr.mxu0 0.0
      %277 = vmatpush1.msra.mxu0 0.0
      %278 = vmatprep.mubr.f32.mxu0 0.0
      %279 = vmatmul.mubr.f32.gmra.mrb[0].mxu0 %v212
      %v280 = vpop.f32.mrb[0].mxu0
      %v281 = vadd.f32 %v208, %v280
      %v282 = vpop.f32.mrb[0].mxu0
      %283 = vdwg.mxu0
      %v284 = vmul.f32 %v281, %v281
      %v285 = vsel %vm186, %v284, 0.0
      %286 = vadd.xlane.f32.xlu0 %v285
      %v287 = vpop.xlane.xlu0 %286
      %v288 = vmax.f32 %v287, 1e-24
      %v289 = vrsqrt.pop %v288
      %v290 = vmul.f32 %v281, %v289
      %291 = vst.msk [vmem:[#allocation3] sm:$0x3] %vm186, %v290
    $region29: #{clip_forward.3} parent=1 // pred_fallthru
      _
    // Predicated region
    $region30: #{clip_forward.3} parent=1 // pred_check
      _
    $region31: #{clip_forward.3} parent=1 // pred_check_branch
      %293 = sbr.rel (0) target = $region33
    $region32: #{clip_forward.3} parent=1 // pred_region
      %s295 = ssub.s32 32, 32
      %296 = vsyncadd [#allocation4], %s295
      %s298 = sshll.u32 [#allocation3], 4
      %s299 = int_to_ptr.vmem [resolvable:$true] %s298
      %301 = dma.vmem_to_hbm [thread:$0]  %s299, 32, %s5, [#allocation4]
    $region33: #{clip_forward.3} parent=1 // pred_fallthru
      _
    // Predicated region
    $region34: #{clip_forward.3} parent=1 // pred_check
      _
    $region35: #{clip_forward.3} parent=1 // pred_check_branch
      %303 = sbr.rel (0) target = $region37
    $region36: #{clip_forward.3} parent=1 // pred_region
      %304 = dma.done [#allocation4], 32
    $region37: #{clip_forward.3} parent=1 // pred_fallthru
      _
    %305 = vsyncpa [#allocation4], 1

// kernel: clip_forward.2
$region0: #{clip_forward.2}
  #allocation0 [shape = 'u32[]', space=smem, size = 0x4, offset = 0x4, fixed_abs, tag = 'smem constant byte address 0x4 - core index']
  #allocation1 [shape = 'u32[144,128]{1,0:T(1,128)}', space=vmem, size = 0x12000, scoped, tag = 'internal scratch']
  #allocation2 [shape = 'f32[2,32]{1,0:T(2,128)}', space=vmem, size = 0x400, scoped, tag = 'scratch operand']
  %s0 = inlined_call_operand.vmem [shape: f32[2,16,32], index: 0, kind: input, shape index: {}]
  %s1 = inlined_call_operand.vmem [shape: f32[2,1,16], index: 1, kind: input, shape index: {}]
  %s2 = inlined_call_operand.vmem [shape: f32[2,1], index: 2, kind: input, shape index: {}]
  %s3 = inlined_call_operand.hbm [shape: f32[32,32], index: 3, kind: input, shape index: {}]
  %s4 = inlined_call_operand.vmem [shape: f32[1,32], index: 4, kind: input, shape index: {}]
  %s5 = inlined_call_operand.hbm [shape: f32[2,32], index: 5, kind: output, shape index: {}]
  %s6 = sld [smem:[#allocation0]]
  $region42: #{clip_forward.2} parent=0
    _
  %s8 = ssub.s32 1, %s6
  %s9 = scalar_select 0, %s8, %s6
  $region1: #{clip_forward.2} parent=0
    #allocation3 [shape = 'u8[16384]{0}', space=vmem, size = 0x4000, scoped, tag = 'input window, operand 3, single buffered']
    #allocation4 [shape = 's32[1]{0}', space=sflag, size = 0x4, scoped, tag = 'scoped memory for clip_forward.2']
    #allocation5 [shape = 's32[1]{0}', space=sflag, size = 0x4, scoped, tag = 'scoped memory for clip_forward.2']
    #allocation6 [shape = 'u8[1024]{0}', space=vmem, size = 0x400, scoped, tag = 'output window, operand 0, single buffered']
    %10 = vsyncpa [#allocation4], 0
    %11 = vsyncpa [#allocation5], 0
    // Predicated region
    $region2: #{clip_forward.2} parent=1 // pred_check
      _
    $region3: #{clip_forward.2} parent=1 // pred_check_branch
      %13 = sbr.rel (0) target = $region5
    $region4: #{clip_forward.2} parent=1 // pred_region
      _
    $region5: #{clip_forward.2} parent=1 // pred_fallthru
      _
    // Predicated region
    $region6: #{clip_forward.2} parent=1 // pred_check
      _
    $region7: #{clip_forward.2} parent=1 // pred_check_branch
      %15 = sbr.rel (0) target = $region9
    $region8: #{clip_forward.2} parent=1 // pred_region
      _
    $region9: #{clip_forward.2} parent=1 // pred_fallthru
      _
    // Predicated region
    $region10: #{clip_forward.2} parent=1 // pred_check
      _
    $region11: #{clip_forward.2} parent=1 // pred_check_branch
      %17 = sbr.rel (0) target = $region13
    $region12: #{clip_forward.2} parent=1 // pred_region
      _
    $region13: #{clip_forward.2} parent=1 // pred_fallthru
      _
    // Predicated region
    $region14: #{clip_forward.2} parent=1 // pred_check
      _
    $region15: #{clip_forward.2} parent=1 // pred_check_branch
      %19 = sbr.rel (0) target = $region17
    $region16: #{clip_forward.2} parent=1 // pred_region
      %s21 = ssub.s32 512, 512
      %22 = vsyncadd [#allocation4], %s21
      %s23 = sshll.u32 [#allocation3], 4
      %s24 = int_to_ptr.vmem [resolvable:$true] %s23
      %29 = dma.hbm_to_vmem [thread:$0]  %s3, 512, %s24, [#allocation4], 128, 128, 8
    $region17: #{clip_forward.2} parent=1 // pred_fallthru
      _
    // Predicated region
    $region18: #{clip_forward.2} parent=1 // pred_check
      _
    $region19: #{clip_forward.2} parent=1 // pred_check_branch
      %31 = sbr.rel (0) target = $region21
    $region20: #{clip_forward.2} parent=1 // pred_region
      _
    $region21: #{clip_forward.2} parent=1 // pred_fallthru
      _
    // Predicated region
    $region22: #{clip_forward.2} parent=1 // pred_check
      _
    $region23: #{clip_forward.2} parent=1 // pred_check_branch
      %33 = sbr.rel (0) target = $region25
    $region24: #{clip_forward.2} parent=1 // pred_region
      %34 = dma.done [#allocation4], 512
    $region25: #{clip_forward.2} parent=1 // pred_fallthru
      _
    %p35 = scmp.eq.s32.totalorder 0, 0
    // Predicated region
    $region26: #{clip_forward.2} parent=1 // pred_check
      %p36 = pneg %p35
    $region27: #{clip_forward.2} parent=1 // pred_check_branch
      %38 = sbr.rel (%p36) target = $region29
    $region28: #{clip_forward.2} parent=1 // pred_region
      %vm39 = vcmask 254976
      %40 = vst.msk [vmem:[#allocation2] sm:$0x3] %vm39, 0.0
    $region29: #{clip_forward.2} parent=1 // pred_fallthru
      _
    %v41 = vld [vmem:[%s0] sm:$0xff]
    %v42 = vld [vmem:[%s0 + $0x8] sm:$0xff]
    %v43 = vld [vmem:[%s0 + $0x10] sm:$0xff]
    %v44 = vld [vmem:[%s0 + $0x18] sm:$0xff]
    %v45 = vld [vmem:[%s1] sm:$0x1]
    %v46 = vld [vmem:[%s1 + $0x1] sm:$0x1]
    %vm47 = vcmask 130048
    %v49 = vsel %vm47, %v45, 0
    %51 = vmatprep.subr.mxu0 0.0
    %52 = vmatpush1.msra.mxu0 %v41
    %53 = vmatprep.subr.mxu0 0.0
    %54 = vmatpush1.msra.mxu0 %v42
    %55 = vmatprep.subr.mxu0 0.0
    %56 = vmatpush1.msra.mxu0 0.0
    %57 = vmatprep.subr.mxu0 0.0
    %58 = vmatpush1.msra.mxu0 0.0
    %59 = vmatprep.subr.mxu0 0.0
    %60 = vmatpush1.msra.mxu0 0.0
    %61 = vmatprep.subr.mxu0 0.0
    %62 = vmatpush1.msra.mxu0 0.0
    %63 = vmatprep.subr.mxu0 0.0
    %64 = vmatpush1.msra.mxu0 0.0
    %65 = vmatprep.subr.mxu0 0.0
    %66 = vmatpush1.msra.mxu0 0.0
    %67 = vmatprep.subr.mxu0 0.0
    %68 = vmatpush1.msra.mxu0 0.0
    %69 = vmatprep.subr.mxu0 0.0
    %70 = vmatpush1.msra.mxu0 0.0
    %71 = vmatprep.subr.mxu0 0.0
    %72 = vmatpush1.msra.mxu0 0.0
    %73 = vmatprep.subr.mxu0 0.0
    %74 = vmatpush1.msra.mxu0 0.0
    %75 = vmatprep.subr.mxu0 0.0
    %76 = vmatpush1.msra.mxu0 0.0
    %77 = vmatprep.subr.mxu0 0.0
    %78 = vmatpush1.msra.mxu0 0.0
    %79 = vmatprep.subr.mxu0 0.0
    %80 = vmatpush1.msra.mxu0 0.0
    %81 = vmatprep.subr.mxu0 0.0
    %82 = vmatpush1.msra.mxu0 0.0
    %83 = vmatprep.subr.mxu0 0.0
    %84 = vmatpush1.msra.mxu0 0.0
    %85 = vmatprep.subr.mxu0 0.0
    %86 = vmatpush1.msra.mxu0 0.0
    %87 = vmatprep.subr.mxu0 0.0
    %88 = vmatpush1.msra.mxu0 0.0
    %89 = vmatprep.subr.mxu0 0.0
    %90 = vmatpush1.msra.mxu0 0.0
    %91 = vmatprep.subr.mxu0 0.0
    %92 = vmatpush1.msra.mxu0 0.0
    %93 = vmatprep.subr.mxu0 0.0
    %94 = vmatpush1.msra.mxu0 0.0
    %95 = vmatprep.subr.mxu0 0.0
    %96 = vmatpush1.msra.mxu0 0.0
    %97 = vmatprep.subr.mxu0 0.0
    %98 = vmatpush1.msra.mxu0 0.0
    %99 = vmatprep.subr.mxu0 0.0
    %100 = vmatpush1.msra.mxu0 0.0
    %101 = vmatprep.subr.mxu0 0.0
    %102 = vmatpush1.msra.mxu0 0.0
    %103 = vmatprep.subr.mxu0 0.0
    %104 = vmatpush1.msra.mxu0 0.0
    %105 = vmatprep.subr.mxu0 0.0
    %106 = vmatpush1.msra.mxu0 0.0
    %107 = vmatprep.subr.mxu0 0.0
    %108 = vmatpush1.msra.mxu0 0.0
    %109 = vmatprep.subr.mxu0 0.0
    %110 = vmatpush1.msra.mxu0 0.0
    %111 = vmatprep.subr.mxu0 0.0
    %112 = vmatpush1.msra.mxu0 0.0
    %113 = vmatprep.subr.mxu0 0.0
    %114 = vmatpush1.msra.mxu0 0.0
    %115 = vmatprep.mubr.f32.mxu0 0.0
    %116 = vmatmul.mubr.f32.gmra.mrb[0].mxu0 %v49
    %v117 = vpop.f32.mrb[0].mxu0
    %v118 = vadd.f32 0.0, %v117
    %v119 = vpop.f32.mrb[0].mxu0
    %120 = vdwg.mxu0
    %v122 = vsel %vm47, %v46, 0
    %124 = vmatprep.subr.mxu0 0.0
    %125 = vmatpush1.msra.mxu0 %v43
    %126 = vmatprep.subr.mxu0 0.0
    %127 = vmatpush1.msra.mxu0 %v44
    %128 = vmatprep.subr.mxu0 0.0
    %129 = vmatpush1.msra.mxu0 0.0
    %130 = vmatprep.subr.mxu0 0.0
    %131 = vmatpush1.msra.mxu0 0.0
    %132 = vmatprep.subr.mxu0 0.0
    %133 = vmatpush1.msra.mxu0 0.0
    %134 = vmatprep.subr.mxu0 0.0
    %135 = vmatpush1.msra.mxu0 0.0
    %136 = vmatprep.subr.mxu0 0.0
    %137 = vmatpush1.msra.mxu0 0.0
    %138 = vmatprep.subr.mxu0 0.0
    %139 = vmatpush1.msra.mxu0 0.0
    %140 = vmatprep.subr.mxu0 0.0
    %141 = vmatpush1.msra.mxu0 0.0
    %142 = vmatprep.subr.mxu0 0.0
    %143 = vmatpush1.msra.mxu0 0.0
    %144 = vmatprep.subr.mxu0 0.0
    %145 = vmatpush1.msra.mxu0 0.0
    %146 = vmatprep.subr.mxu0 0.0
    %147 = vmatpush1.msra.mxu0 0.0
    %148 = vmatprep.subr.mxu0 0.0
    %149 = vmatpush1.msra.mxu0 0.0
    %150 = vmatprep.subr.mxu0 0.0
    %151 = vmatpush1.msra.mxu0 0.0
    %152 = vmatprep.subr.mxu0 0.0
    %153 = vmatpush1.msra.mxu0 0.0
    %154 = vmatprep.subr.mxu0 0.0
    %155 = vmatpush1.msra.mxu0 0.0
    %156 = vmatprep.subr.mxu0 0.0
    %157 = vmatpush1.msra.mxu0 0.0
    %158 = vmatprep.subr.mxu0 0.0
    %159 = vmatpush1.msra.mxu0 0.0
    %160 = vmatprep.subr.mxu0 0.0
    %161 = vmatpush1.msra.mxu0 0.0
    %162 = vmatprep.subr.mxu0 0.0
    %163 = vmatpush1.msra.mxu0 0.0
    %164 = vmatprep.subr.mxu0 0.0
    %165 = vmatpush1.msra.mxu0 0.0
    %166 = vmatprep.subr.mxu0 0.0
    %167 = vmatpush1.msra.mxu0 0.0
    %168 = vmatprep.subr.mxu0 0.0
    %169 = vmatpush1.msra.mxu0 0.0
    %170 = vmatprep.subr.mxu0 0.0
    %171 = vmatpush1.msra.mxu0 0.0
    %172 = vmatprep.subr.mxu0 0.0
    %173 = vmatpush1.msra.mxu0 0.0
    %174 = vmatprep.subr.mxu0 0.0
    %175 = vmatpush1.msra.mxu0 0.0
    %176 = vmatprep.subr.mxu0 0.0
    %177 = vmatpush1.msra.mxu0 0.0
    %178 = vmatprep.subr.mxu0 0.0
    %179 = vmatpush1.msra.mxu0 0.0
    %180 = vmatprep.subr.mxu0 0.0
    %181 = vmatpush1.msra.mxu0 0.0
    %182 = vmatprep.subr.mxu0 0.0
    %183 = vmatpush1.msra.mxu0 0.0
    %184 = vmatprep.subr.mxu0 0.0
    %185 = vmatpush1.msra.mxu0 0.0
    %186 = vmatprep.subr.mxu0 0.0
    %187 = vmatpush1.msra.mxu0 0.0
    %188 = vmatprep.mubr.f32.mxu0 0.0
    %189 = vmatmul.mubr.f32.gmra.mrb[0].mxu0 %v122
    %v190 = vpop.f32.mrb[0].mxu0
    %v191 = vadd.f32 0.0, %v190
    %v192 = vpop.f32.mrb[0].mxu0
    %193 = vdwg.mxu0
    %v194 = vld [vmem:[#allocation2] sm:$0x3]
    %v197 = vrot.slane %v191, 7
    %vm198 = vcmask 1041409
    %v199 = vsel %vm198, %v197, %v118
    %v201 = vadd.f32 %v194, %v199
    %vm202 = vcmask 254976
    %203 = vst.msk [vmem:[#allocation2] sm:$0x3] %vm202, %v201
    // Predicated region
    $region30: #{clip_forward.2} parent=1 // pred_check
      %p204 = pneg %p35
    $region31: #{clip_forward.2} parent=1 // pred_check_branch
      %206 = sbr.rel (%p204) target = $region33
    $region32: #{clip_forward.2} parent=1 // pred_region
      %v207 = vld [vmem:[#allocation2] sm:$0x3]
      %v208 = vld [vmem:[%s2] sm:$0x3]
      %210 = vset.pattern.permute.xlu0 0
      %211 = vperm.xlu0 %210, %v208
      %v212 = vpop.permute.xlu0 %211
      %v214 = vmul.f32 %v207, %v212
      %v215 = vld [vmem:[#allocation3] sm:$0xff]
      %v216 = vld [vmem:[#allocation3 + $0x8] sm:$0xff]
      %v217 = vld [vmem:[#allocation3 + $0x10] sm:$0xff]
      %v218 = vld [vmem:[#allocation3 + $0x18] sm:$0xff]
      %v219 = vld [vmem:[%s4] sm:$0x1]
      %v221 = vlaneseq
      %v222 = vshrl.u32 %v221, 7
      %v223 = vsub.s32 0, %v222
      %v224 = vrot.slane %v219, %v223
      %vm226 = vcmask 261120
      %v228 = vsel %vm226, %v214, 0
      %230 = vmatprep.subr.mxu0 0.0
      %231 = vmatpush1.msra.mxu0 %v215
      %232 = vmatprep.subr.mxu0 0.0
      %233 = vmatpush1.msra.mxu0 %v216
      %234 = vmatprep.subr.mxu0 0.0
      %235 = vmatpush1.msra.mxu0 %v217
      %236 = vmatprep.subr.mxu0 0.0
      %237 = vmatpush1.msra.mxu0 %v218
      %238 = vmatprep.subr.mxu0 0.0
      %239 = vmatpush1.msra.mxu0 0.0
      %240 = vmatprep.subr.mxu0 0.0
      %241 = vmatpush1.msra.mxu0 0.0
      %242 = vmatprep.subr.mxu0 0.0
      %243 = vmatpush1.msra.mxu0 0.0
      %244 = vmatprep.subr.mxu0 0.0
      %245 = vmatpush1.msra.mxu0 0.0
      %246 = vmatprep.subr.mxu0 0.0
      %247 = vmatpush1.msra.mxu0 0.0
      %248 = vmatprep.subr.mxu0 0.0
      %249 = vmatpush1.msra.mxu0 0.0
      %250 = vmatprep.subr.mxu0 0.0
      %251 = vmatpush1.msra.mxu0 0.0
      %252 = vmatprep.subr.mxu0 0.0
      %253 = vmatpush1.msra.mxu0 0.0
      %254 = vmatprep.subr.mxu0 0.0
      %255 = vmatpush1.msra.mxu0 0.0
      %256 = vmatprep.subr.mxu0 0.0
      %257 = vmatpush1.msra.mxu0 0.0
      %258 = vmatprep.subr.mxu0 0.0
      %259 = vmatpush1.msra.mxu0 0.0
      %260 = vmatprep.subr.mxu0 0.0
      %261 = vmatpush1.msra.mxu0 0.0
      %262 = vmatprep.subr.mxu0 0.0
      %263 = vmatpush1.msra.mxu0 0.0
      %264 = vmatprep.subr.mxu0 0.0
      %265 = vmatpush1.msra.mxu0 0.0
      %266 = vmatprep.subr.mxu0 0.0
      %267 = vmatpush1.msra.mxu0 0.0
      %268 = vmatprep.subr.mxu0 0.0
      %269 = vmatpush1.msra.mxu0 0.0
      %270 = vmatprep.subr.mxu0 0.0
      %271 = vmatpush1.msra.mxu0 0.0
      %272 = vmatprep.subr.mxu0 0.0
      %273 = vmatpush1.msra.mxu0 0.0
      %274 = vmatprep.subr.mxu0 0.0
      %275 = vmatpush1.msra.mxu0 0.0
      %276 = vmatprep.subr.mxu0 0.0
      %277 = vmatpush1.msra.mxu0 0.0
      %278 = vmatprep.subr.mxu0 0.0
      %279 = vmatpush1.msra.mxu0 0.0
      %280 = vmatprep.subr.mxu0 0.0
      %281 = vmatpush1.msra.mxu0 0.0
      %282 = vmatprep.subr.mxu0 0.0
      %283 = vmatpush1.msra.mxu0 0.0
      %284 = vmatprep.subr.mxu0 0.0
      %285 = vmatpush1.msra.mxu0 0.0
      %286 = vmatprep.subr.mxu0 0.0
      %287 = vmatpush1.msra.mxu0 0.0
      %288 = vmatprep.subr.mxu0 0.0
      %289 = vmatpush1.msra.mxu0 0.0
      %290 = vmatprep.subr.mxu0 0.0
      %291 = vmatpush1.msra.mxu0 0.0
      %292 = vmatprep.subr.mxu0 0.0
      %293 = vmatpush1.msra.mxu0 0.0
      %294 = vmatprep.mubr.f32.mxu0 0.0
      %295 = vmatmul.mubr.f32.gmra.mrb[0].mxu0 %v228
      %v296 = vpop.f32.mrb[0].mxu0
      %v297 = vadd.f32 %v224, %v296
      %v298 = vpop.f32.mrb[0].mxu0
      %299 = vdwg.mxu0
      %v300 = vmul.f32 %v297, %v297
      %v301 = vsel %vm202, %v300, 0.0
      %302 = vadd.xlane.f32.xlu0 %v301
      %v303 = vpop.xlane.xlu0 %302
      %v304 = vmax.f32 %v303, 1e-24
      %v305 = vrsqrt.pop %v304
      %v306 = vmul.f32 %v297, %v305
      %307 = vst.msk [vmem:[#allocation6] sm:$0x3] %vm202, %v306
    $region33: #{clip_forward.2} parent=1 // pred_fallthru
      _
    // Predicated region
    $region34: #{clip_forward.2} parent=1 // pred_check
      _
    $region35: #{clip_forward.2} parent=1 // pred_check_branch
      %309 = sbr.rel (0) target = $region37
    $region36: #{clip_forward.2} parent=1 // pred_region
      %s311 = ssub.s32 32, 32
      %312 = vsyncadd [#allocation5], %s311
      %s314 = sshll.u32 [#allocation6], 4
      %s315 = int_to_ptr.vmem [resolvable:$true] %s314
      %317 = dma.vmem_to_hbm [thread:$0]  %s315, 32, %s5, [#allocation5]
    $region37: #{clip_forward.2} parent=1 // pred_fallthru
      _
    // Predicated region
    $region38: #{clip_forward.2} parent=1 // pred_check
      _
    $region39: #{clip_forward.2} parent=1 // pred_check_branch
      %319 = sbr.rel (0) target = $region41
    $region40: #{clip_forward.2} parent=1 // pred_region
      %320 = dma.done [#allocation5], 32
    $region41: #{clip_forward.2} parent=1 // pred_fallthru
      _
    %321 = vsyncpa [#allocation4], 1
    %322 = vsyncpa [#allocation5], 1

</llo_original>
